<compile_context>
chip_gen: v6e
topology: v6e:2x2x1
jax: 0.10.0
libtpu: 0.0.40
codegen_flags: <defaults>
</compile_context>

<pallas_src>
import functools

import jax
import jax.numpy as jnp
from jax.experimental import pallas as pl
from jax.experimental.pallas import tpu as pltpu


# ---------------------------------------------------------------------------
# Fused synthetic-encoder path: embedding gather + mean pool in one kernel.
# ---------------------------------------------------------------------------
def _fused_embed_mean_kernel(ids_ref, emb_ref, o_ref, *, seq_len, inv_s):
    # ids_ref: (B, S) int32 in SMEM (scalar prefetch)
    # emb_ref: (V, H) embedding table, resident in VMEM
    # o_ref:   (B, H) pooled output, resident across the whole grid
    b = pl.program_id(0)
    h = emb_ref.shape[1]

    def body(s, acc):
        idx = ids_ref[b, s]                                   # scalar gather index from SMEM
        return acc + emb_ref[pl.ds(idx, 1), :].astype(jnp.float32)

    acc = jax.lax.fori_loop(
        0, seq_len, body, jnp.zeros((1, h), jnp.float32),
        unroll=True if seq_len <= 32 else 8)
    o_ref[pl.ds(b, 1), :] = (acc * inv_s).astype(o_ref.dtype)


def fused_embed_mean_pool(input_ids: jax.Array, embed_table: jax.Array) -> jax.Array:
    """mean(embed_table[input_ids], axis=1) without materializing [B, S, H] in HBM."""
    B, S = input_ids.shape
    V, H = embed_table.shape
    kernel = functools.partial(_fused_embed_mean_kernel, seq_len=S, inv_s=1.0 / S)
    return pl.pallas_call(
        kernel,
        out_shape=jax.ShapeDtypeStruct((B, H), embed_table.dtype),
        grid_spec=pltpu.PrefetchScalarGridSpec(
            num_scalar_prefetch=1,
            grid=(B,),
            in_specs=[pl.BlockSpec((V, H), lambda b, ids: (0, 0))],
            out_specs=pl.BlockSpec((B, H), lambda b, ids: (0, 0)),
        ),
        compiler_params=pltpu.CompilerParams(
            # Output block is shared across the batch axis -> keep it "arbitrary".
            dimension_semantics=("arbitrary",),
        ),
    )(input_ids.astype(jnp.int32), embed_table)


# ---------------------------------------------------------------------------
# Standalone mean-pool over dim=1 of a [B, S, H] last_hidden_state.
# ---------------------------------------------------------------------------
def _mean_pool_kernel_single(h_ref, o_ref, *, inv_s):
    # Single sequence block: no accumulator scratch, no pl.when branches.
    o_ref[...] = (jnp.sum(h_ref[...], axis=1, dtype=jnp.float32) * inv_s).astype(o_ref.dtype)


def _mean_pool_kernel_multi(h_ref, o_ref, acc_ref, *, inv_s):
    # h_ref: (TB, TS, H); o_ref/acc_ref: (TB, H).  Seq axis is the inner reduction axis.
    s = pl.program_id(1)

    @pl.when(s == 0)
    def _():
        acc_ref[...] = jnp.zeros_like(acc_ref)

    # f32 accumulation fused into the reduce (no full f32 copy of a bf16 tile).
    acc_ref[...] += jnp.sum(h_ref[...], axis=1, dtype=jnp.float32)

    @pl.when(s == pl.num_programs(1) - 1)
    def _():
        o_ref[...] = (acc_ref[...] * inv_s).astype(o_ref.dtype)


def _generation_budgets():
    """(block_budget_bytes, vmem_limit_bytes, prefer_batch_split) per TPU generation."""
    kind = ""
    try:
        kind = jax.devices()[0].device_kind.lower()
    except Exception:
        pass
    if "v5" in kind:                       # v5e: 128 MiB VMEM, ~0.8 TB/s HBM -> modest blocks
        return 8 << 20, 64 << 20, False
    if "v6" in kind:                       # v6e: 128 MiB VMEM, ~1.4 TB/s HBM -> big blocks
        return 28 << 20, 96 << 20, False
    if "7" in kind:                        # v7x: only 64 MiB VMEM/TC, 2 TCs -> split batch
        return 14 << 20, 44 << 20, True
    return 12 << 20, 48 << 20, False       # conservative default


def _sublane_min(dtype) -> int:
    return {4: 8, 2: 16, 1: 32}.get(jnp.dtype(dtype).itemsize, 8)


def _choose_tiles(B, S, H, dtype, block_budget_bytes, prefer_batch_split):
    """Pick (TB, TS) so one (TB, TS, H) input block fits the budget, respecting tiling rules."""
    itemsize = jnp.dtype(dtype).itemsize
    sub = _sublane_min(dtype)

    def blk_bytes(tb, ts):
        return tb * ts * H * itemsize

    # Legal batch tiles (for the (TB, H) output slab): full B, or divisors of B aligned to
    # the packed-dtype sublane minimum.  Largest first.
    tb_all = [B] + [d for d in range(B - 1, 0, -1) if B % d == 0 and d % sub == 0]
    if prefer_batch_split:
        split = [d for d in tb_all if d < B]
        tb_cands = (split + [B]) if split else tb_all   # >=2 parallel steps for 2 TCs (v7x)
    else:
        tb_cands = tb_all
    # Legal sequence tiles: full S, or aligned divisors.  Largest first.
    ts_all = [S] + [d for d in range(S - 1, 0, -1) if S % d == 0 and d % sub == 0]

    # Prefer a full-sequence block (single pass, biggest DMAs).
    for tb in tb_cands:
        if blk_bytes(tb, S) <= block_budget_bytes:
            return tb, S
    # Otherwise smallest legal batch tile, tile the sequence axis under the budget.
    tb = min(tb_all)
    for ts in ts_all:
        if blk_bytes(tb, ts) <= block_budget_bytes:
            return tb, ts
    # Fallback (e.g. prime S): may exceed the budget; the caller sizes vmem_limit to cover it.
    return tb, min(ts_all)


def mfbert_hiv_featurize(last_hidden_state: jax.Array,
                         *,
                         block_budget_bytes: int | None = None,
                         vmem_limit_bytes: int | None = None,
                         allow_input_fusion: bool = True) -> jax.Array:
    """torch.mean(last_hidden_state, dim=1) as a batch-tiled Pallas TPU kernel."""
    B, S, H = last_hidden_state.shape
    dtype = last_hidden_state.dtype
    itemsize = jnp.dtype(dtype).itemsize

    gen_block, gen_vmem, prefer_split = _generation_budgets()
    if block_budget_bytes is None:
        block_budget_bytes = gen_block
    if vmem_limit_bytes is None:
        vmem_limit_bytes = gen_vmem

    TB, TS = _choose_tiles(B, S, H, dtype, block_budget_bytes, prefer_split)
    n_b, n_s = B // TB, S // TS

    # Guard: size the scoped-VMEM limit for double-buffered in/out blocks + f32 accumulator,
    # so even the over-budget fallback tile never trips the limit at compile time.
    in_blk = TB * TS * H * itemsize
    out_blk = TB * H * itemsize
    acc_blk = TB * H * 4 if n_s > 1 else 0
    need = 2 * in_blk + 2 * out_blk + acc_blk
    vmem_limit_bytes = max(int(vmem_limit_bytes), int(need * 1.25))

    inv_s = 1.0 / S
    fusion = [True] if allow_input_fusion else None

    if n_s == 1:
        kernel = functools.partial(_mean_pool_kernel_single, inv_s=inv_s)
        grid_spec = pltpu.PrefetchScalarGridSpec(
            num_scalar_prefetch=0,
            grid=(n_b,),
            in_specs=[pl.BlockSpec((TB, S, H), lambda b: (b, 0, 0))],
            out_specs=pl.BlockSpec((TB, H), lambda b: (b, 0)),
        )
        dims = ("parallel",)
    else:
        kernel = functools.partial(_mean_pool_kernel_multi, inv_s=inv_s)
        grid_spec = pltpu.PrefetchScalarGridSpec(
            num_scalar_prefetch=0,
            grid=(n_b, n_s),
            in_specs=[pl.BlockSpec((TB, TS, H), lambda b, s: (b, s, 0))],
            out_specs=pl.BlockSpec((TB, H), lambda b, s: (b, 0)),
            scratch_shapes=[pltpu.VMEM((TB, H), jnp.float32)],
        )
        dims = ("parallel", "arbitrary")

    return pl.pallas_call(
        kernel,
        out_shape=jax.ShapeDtypeStruct((B, H), dtype),
        grid_spec=grid_spec,
        compiler_params=pltpu.CompilerParams(
            dimension_semantics=dims,
            vmem_limit_bytes=vmem_limit_bytes,
            allow_input_fusion=fusion,
        ),
    )(last_hidden_state)


# ---------------------------------------------------------------------------
# Module-level forward (semantics of MFBERT_HIV_featurizer.forward).
# ---------------------------------------------------------------------------
def synthetic_l1(inputs: dict, embed_table: jax.Array) -> tuple:
    """Deterministic stand-in for the (undefined) MFBERT encoder `self.l1`."""
    # TODO(synk): self.l1 is None in the reference __init__ (no architecture / checkpoint);
    # an embedding lookup stands in so the featurizer's own compute can be exercised.
    return (embed_table[inputs["input_ids"]],)   # element [0] == last_hidden_state [B, S, H]


def mfbert_hiv_featurizer_forward(inputs: dict, embed_table: jax.Array,
                                  *, fuse: bool = True) -> jax.Array:
    if fuse:
        # Fused path: gather + mean-pool in one Pallas kernel; [B, S, H] never hits HBM.
        return fused_embed_mean_pool(inputs["input_ids"], embed_table)
    output_1 = synthetic_l1(inputs, embed_table)
    return mfbert_hiv_featurize(output_1[0])     # == torch.mean(output_1[0], dim=1)


if __name__ == "__main__":
    key = jax.random.PRNGKey(0)
    k_emb, k_ids, k_x2 = jax.random.split(key, 3)

    # Small shapes consistent with a transformer featurizer forward.
    B, S, H, VOCAB = 2, 8, 128, 64

    embed_table = jax.random.normal(k_emb, (VOCAB, H), dtype=jnp.float32)
    input_ids = jax.random.randint(k_ids, (B, S), 0, VOCAB, dtype=jnp.int32)
    attention_mask = jnp.ones((B, S), dtype=jnp.int32)
    inputs = {"input_ids": input_ids, "attention_mask": attention_mask}

    # Reference: plain-JAX mean over dim=1 of the (synthetic) last_hidden_state.
    last_hidden_state = embed_table[input_ids]
    ref = jnp.mean(last_hidden_state, axis=1)

    # 1) Fused gather + mean-pool path (no [B, S, H] HBM round-trip).
    out_fused = jax.block_until_ready(mfbert_hiv_featurizer_forward(inputs, embed_table))
    assert out_fused.shape == (B, H)
    assert jnp.allclose(out_fused, ref, atol=1e-5, rtol=1e-5)

    # 2) Standalone mean-pool kernel on an encoder-produced [B, S, H] tensor (f32, single pass).
    out_pool = jax.block_until_ready(mfbert_hiv_featurize(last_hidden_state))
    assert out_pool.shape == (B, H)
    assert jnp.allclose(out_pool, ref, atol=1e-5, rtol=1e-5)

    # 3) bf16 input path: f32 accumulation inside the reduce, cast on store.
    lhs_bf16 = last_hidden_state.astype(jnp.bfloat16)
    out_bf16 = jax.block_until_ready(mfbert_hiv_featurize(lhs_bf16))
    ref_bf16 = jnp.mean(lhs_bf16.astype(jnp.float32), axis=1)
    assert out_bf16.shape == (B, H)
    assert jnp.allclose(out_bf16.astype(jnp.float32), ref_bf16, atol=2e-2, rtol=2e-2)

    # 4) Force the tiled-sequence (accumulator) path with a tiny block budget.
    B2, S2, H2 = 8, 16, 128
    x2 = jax.random.normal(k_x2, (B2, S2, H2), dtype=jnp.float32)
    out2 = jax.block_until_ready(mfbert_hiv_featurize(x2, block_budget_bytes=40 * 1024))
    assert out2.shape == (B2, H2)
    assert jnp.allclose(out2, jnp.mean(x2, axis=1), atol=1e-5, rtol=1e-5)

    print("KERNEL_OK")
</pallas_src>

<mosaic_0001>
module attributes {stable_mosaic.version = 11 : i64} {
  func.func @_fused_embed_mean_kernel(%arg0: i32, %arg1: memref<2x8xi32, #tpu.memory_space<smem>>, %arg2: memref<64x128xf32, #tpu.memory_space<vmem>>, %arg3: memref<2x128xf32, #tpu.memory_space<vmem>>) attributes {dimension_semantics = [#tpu.dimension_semantics<arbitrary>], iteration_bounds = array<i64: 2>, scalar_prefetch = 1 : i64, scratch_operands = 0 : i64, tpu.core_type = #tpu.core_type<tc>, window_params = [{pipeline_mode = #tpu.pipeline_mode<synchronous>, transform_indices = @transform_0, window_bounds = array<i64: 64, 128>}, {pipeline_mode = #tpu.pipeline_mode<synchronous>, transform_indices = @transform_1, window_bounds = array<i64: 2, 128>}]} {
    %cst = arith.constant 0.000000e+00 : f32
    %0 = vector.broadcast %cst : f32 to vector<1x128xf32>
    %c0_i32 = arith.constant 0 : i32
    %1 = arith.index_cast %arg0 : i32 to index
    %2 = arith.index_cast %c0_i32 : i32 to index
    %3 = memref.load %arg1[%1, %2] : memref<2x8xi32, #tpu.memory_space<smem>>
    %4 = arith.index_cast %3 : i32 to index
    %c0 = arith.constant 0 : index
    %5 = vector.load %arg2[%4, %c0] : memref<64x128xf32, #tpu.memory_space<vmem>>, vector<1x128xf32>
    %6 = arith.addf %0, %5 : vector<1x128xf32>
    %c1_i32 = arith.constant 1 : i32
    %7 = arith.index_cast %arg0 : i32 to index
    %8 = arith.index_cast %c1_i32 : i32 to index
    %9 = memref.load %arg1[%7, %8] : memref<2x8xi32, #tpu.memory_space<smem>>
    %10 = arith.index_cast %9 : i32 to index
    %c0_0 = arith.constant 0 : index
    %11 = vector.load %arg2[%10, %c0_0] : memref<64x128xf32, #tpu.memory_space<vmem>>, vector<1x128xf32>
    %12 = arith.addf %6, %11 : vector<1x128xf32>
    %c2_i32 = arith.constant 2 : i32
    %13 = arith.index_cast %arg0 : i32 to index
    %14 = arith.index_cast %c2_i32 : i32 to index
    %15 = memref.load %arg1[%13, %14] : memref<2x8xi32, #tpu.memory_space<smem>>
    %16 = arith.index_cast %15 : i32 to index
    %c0_1 = arith.constant 0 : index
    %17 = vector.load %arg2[%16, %c0_1] : memref<64x128xf32, #tpu.memory_space<vmem>>, vector<1x128xf32>
    %18 = arith.addf %12, %17 : vector<1x128xf32>
    %c3_i32 = arith.constant 3 : i32
    %19 = arith.index_cast %arg0 : i32 to index
    %20 = arith.index_cast %c3_i32 : i32 to index
    %21 = memref.load %arg1[%19, %20] : memref<2x8xi32, #tpu.memory_space<smem>>
    %22 = arith.index_cast %21 : i32 to index
    %c0_2 = arith.constant 0 : index
    %23 = vector.load %arg2[%22, %c0_2] : memref<64x128xf32, #tpu.memory_space<vmem>>, vector<1x128xf32>
    %24 = arith.addf %18, %23 : vector<1x128xf32>
    %c4_i32 = arith.constant 4 : i32
    %25 = arith.index_cast %arg0 : i32 to index
    %26 = arith.index_cast %c4_i32 : i32 to index
    %27 = memref.load %arg1[%25, %26] : memref<2x8xi32, #tpu.memory_space<smem>>
    %28 = arith.index_cast %27 : i32 to index
    %c0_3 = arith.constant 0 : index
    %29 = vector.load %arg2[%28, %c0_3] : memref<64x128xf32, #tpu.memory_space<vmem>>, vector<1x128xf32>
    %30 = arith.addf %24, %29 : vector<1x128xf32>
    %c5_i32 = arith.constant 5 : i32
    %31 = arith.index_cast %arg0 : i32 to index
    %32 = arith.index_cast %c5_i32 : i32 to index
    %33 = memref.load %arg1[%31, %32] : memref<2x8xi32, #tpu.memory_space<smem>>
    %34 = arith.index_cast %33 : i32 to index
    %c0_4 = arith.constant 0 : index
    %35 = vector.load %arg2[%34, %c0_4] : memref<64x128xf32, #tpu.memory_space<vmem>>, vector<1x128xf32>
    %36 = arith.addf %30, %35 : vector<1x128xf32>
    %c6_i32 = arith.constant 6 : i32
    %37 = arith.index_cast %arg0 : i32 to index
    %38 = arith.index_cast %c6_i32 : i32 to index
    %39 = memref.load %arg1[%37, %38] : memref<2x8xi32, #tpu.memory_space<smem>>
    %40 = arith.index_cast %39 : i32 to index
    %c0_5 = arith.constant 0 : index
    %41 = vector.load %arg2[%40, %c0_5] : memref<64x128xf32, #tpu.memory_space<vmem>>, vector<1x128xf32>
    %42 = arith.addf %36, %41 : vector<1x128xf32>
    %c7_i32 = arith.constant 7 : i32
    %43 = arith.index_cast %arg0 : i32 to index
    %44 = arith.index_cast %c7_i32 : i32 to index
    %45 = memref.load %arg1[%43, %44] : memref<2x8xi32, #tpu.memory_space<smem>>
    %46 = arith.index_cast %45 : i32 to index
    %c0_6 = arith.constant 0 : index
    %47 = vector.load %arg2[%46, %c0_6] : memref<64x128xf32, #tpu.memory_space<vmem>>, vector<1x128xf32>
    %48 = arith.addf %42, %47 : vector<1x128xf32>
    %c8_i32 = arith.constant 8 : i32
    %cst_7 = arith.constant 1.250000e-01 : f32
    %49 = vector.broadcast %cst_7 : f32 to vector<1x128xf32>
    %50 = arith.mulf %48, %49 : vector<1x128xf32>
    %51 = arith.index_cast %arg0 : i32 to index
    %c0_8 = arith.constant 0 : index
    %52 = vector.load %arg3[%51, %c0_8] : memref<2x128xf32, #tpu.memory_space<vmem>>, vector<1x128xf32>
    tpu.vector_store %arg3[%51, %c0_8], %50 {strides = array<i32>} : memref<2x128xf32, #tpu.memory_space<vmem>>, vector<1x128xf32>,
    return
  }
  func.func @transform_0(%arg0: i32, %arg1: memref<2x8xi32, #tpu.memory_space<smem>>) -> (i32, i32) {
    %c0_i32 = arith.constant 0 : i32
    %c0_i32_0 = arith.constant 0 : i32
    %c0_i32_1 = arith.constant 0 : i32
    return %c0_i32, %c0_i32_0 : i32, i32
  }
  func.func @transform_1(%arg0: i32, %arg1: memref<2x8xi32, #tpu.memory_space<smem>>) -> (i32, i32) {
    %c0_i32 = arith.constant 0 : i32
    %c0_i32_0 = arith.constant 0 : i32
    %c0_i32_1 = arith.constant 0 : i32
    return %c0_i32, %c0_i32_0 : i32, i32
  }
}

</mosaic_0001>

<llo_original>
// kernel: tpu_custom_call.1
$region0: #{tpu_custom_call.1}
  #allocation0 [shape = 'u32[]', space=smem, size = 0x4, offset = 0x4, fixed_abs, tag = 'smem constant byte address 0x4 - core index']
  #allocation1 [shape = 'u32[144,128]{1,0:T(1,128)}', space=vmem, size = 0x12000, scoped, tag = 'internal scratch']
  #allocation2 [shape = 's32[1]{0}', space=sflag, size = 0x4, scoped, tag = 'scoped memory for tpu_custom_call.1']
  #allocation3 [shape = 'u8[1024]{0}', space=smem, size = 0x400, scoped, tag = 'prefetched SMEM operand 0']
  %s0 = inlined_call_operand.hbm [shape: s32[2,8], index: 0, kind: input, shape index: {}]
  %s1 = inlined_call_operand.hbm [shape: f32[64,128], index: 1, kind: input, shape index: {}]
  %s2 = inlined_call_operand.hbm [shape: f32[2,128], index: 2, kind: output, shape index: {}]
  %s3 = sld [smem:[#allocation0]]
  $region41: #{tpu_custom_call.1} parent=0
    _
  %s5 = ssub.s32 1, %s3
  %s6 = scalar_select 0, %s5, %s3
  %8 = dma.hbm_to_smem %s0, 32, [#allocation3], [#allocation2]
  %9 = dma.done [#allocation2], 32
  %10 = sfence
  $region1: #{tpu_custom_call.1} parent=0
    #allocation4 [shape = 'u8[32768]{0}', space=vmem, size = 0x8000, scoped, tag = 'input window, operand 1, single buffered']
    #allocation5 [shape = 's32[2]{0}', space=sflag, size = 0x8, scoped, tag = 'scoped memory for tpu_custom_call.1']
    #allocation6 [shape = 's32[2]{0}', space=sflag, size = 0x8, scoped, tag = 'scoped memory for tpu_custom_call.1']
    #allocation7 [shape = 'u8[1024]{0}', space=vmem, size = 0x400, scoped, tag = 'output window, operand 0, single buffered']
    %11 = vsyncpa [#allocation5], 0
    %12 = vsyncpa [#allocation6], 0
    loop: start=0, step=1, limit=4
    $region2: #{tpu_custom_call.1} parent=1 // loop_pre_header
      _
    $region3: #{tpu_custom_call.1} parent=1 // loop_header
      %s14 = sphi 0, %s18
      %p15 = scmp.ge.s32.totalorder %s14, 4
      %s22 = sphi 0, %s22
      %s24 = sphi 0, %s22
      %s25 = sphi 0, %s24
      %s39 = sphi 0, %s25
      %s43 = sphi 0, %s43
      %s45 = sphi 0, %s43
      %s46 = sphi 0, %s45
      %s60 = sphi 0, %s46
    $region4: #{tpu_custom_call.1} parent=1 // loop_header_branch
      %17 = sbr.rel (%p15) target = $region8
    $region5: #{tpu_custom_call.1} parent=1 // loop_body
      %s19 = ssub.s32 %s14, 1
      %s20 = ssub.s32 %s14, 2
      %s21 = sadd.s32 %s14, 1
      %s23 = sadd.s32 %s22, 1
      %p26 = scmp.eq.s32.totalorder %s14, 1
      %p27 = scmp.ne.s32.totalorder %s22, %s24
      %p28 = scmp.eq.s32.totalorder %s14, 0
      %p29 = por %p27, %p28
      %p30 = scmp.ne.s32.totalorder %s22, %s24
      %p31 = scmp.eq.s32.totalorder %s19, 1
      %p32 = por %p30, %p31
      %p33 = scmp.ne.s32.totalorder %s24, %s25
      %p34 = scmp.eq.s32.totalorder %s19, 0
      %p35 = por %p33, %p34
      %p36 = scmp.ne.s32.totalorder %s24, %s25
      %p37 = scmp.eq.s32.totalorder %s20, 1
      %p38 = por %p36, %p37
      %p40 = scmp.ne.s32.totalorder %s25, %s39
      %p41 = scmp.eq.s32.totalorder %s20, 0
      %p42 = por %p40, %p41
      %s44 = sadd.s32 %s43, 1
      %p47 = scmp.eq.s32.totalorder %s14, 1
      %p48 = scmp.ne.s32.totalorder %s43, %s45
      %p49 = scmp.eq.s32.totalorder %s14, 0
      %p50 = por %p48, %p49
      %p51 = scmp.ne.s32.totalorder %s43, %s45
      %p52 = scmp.eq.s32.totalorder %s19, 1
      %p53 = por %p51, %p52
      %p54 = scmp.ne.s32.totalorder %s45, %s46
      %p55 = scmp.eq.s32.totalorder %s19, 0
      %p56 = por %p54, %p55
      %p57 = scmp.ne.s32.totalorder %s45, %s46
      %p58 = scmp.eq.s32.totalorder %s20, 1
      %p59 = por %p57, %p58
      %p61 = scmp.ne.s32.totalorder %s46, %s60
      %p62 = scmp.eq.s32.totalorder %s20, 0
      %p63 = por %p61, %p62
      %p64 = scmp.le.s32.totalorder 1, %s14
      %p65 = scmp.lt.s32.totalorder %s14, 3
      %p66 = pnand %p64, %p65
      %p67 = pneg %p66
      // Predicated region
      $region9: #{tpu_custom_call.1} parent=5 // pred_check
        _
      $region10: #{tpu_custom_call.1} parent=5 // pred_check_branch
        %69 = sbr.rel (%p66) target = $region12
      $region11: #{tpu_custom_call.1} parent=5 // pred_region
        %s70 = ssub.s32 %s14, 1
        // Predicated region
        $region13: #{tpu_custom_call.1} parent=11 // pred_check
          %p71 = pneg %p35
        $region14: #{tpu_custom_call.1} parent=11 // pred_check_branch
          %73 = sbr.rel (%p71) target = $region16
        $region15: #{tpu_custom_call.1} parent=11 // pred_region
          %s75 = ssub.s32 1024, 1024
          %76 = vsyncadd [#allocation5], %s75
          %s77 = sshll.u32 [#allocation4], 4
          %s78 = int_to_ptr.vmem [resolvable:$true] %s77
          %83 = dma.hbm_to_vmem [thread:$0]  %s1, 1024, %s78, [#allocation5], 128, 128, 8
        $region16: #{tpu_custom_call.1} parent=11 // pred_fallthru
          _
      $region12: #{tpu_custom_call.1} parent=5 // pred_fallthru
        _
      %p84 = scmp.lt.s32.totalorder %s14, 2
      // Predicated region
      $region17: #{tpu_custom_call.1} parent=5 // pred_check
        %p85 = pneg %p84
      $region18: #{tpu_custom_call.1} parent=5 // pred_check_branch
        %87 = sbr.rel (%p85) target = $region20
      $region19: #{tpu_custom_call.1} parent=5 // pred_region
        _
      $region20: #{tpu_custom_call.1} parent=5 // pred_fallthru
        _
      %p88 = scmp.le.s32.totalorder 1, %s14
      %p89 = scmp.lt.s32.totalorder %s14, 3
      %p90 = pnand %p88, %p89
      %p91 = pneg %p90
      // Predicated region
      $region21: #{tpu_custom_call.1} parent=5 // pred_check
        _
      $region22: #{tpu_custom_call.1} parent=5 // pred_check_branch
        %93 = sbr.rel (%p90) target = $region24
      $region23: #{tpu_custom_call.1} parent=5 // pred_region
        %s94 = ssub.s32 %s14, 1
        // Predicated region
        $region25: #{tpu_custom_call.1} parent=23 // pred_check
          %p95 = pneg %p35
        $region26: #{tpu_custom_call.1} parent=23 // pred_check_branch
          %97 = sbr.rel (%p95) target = $region28
        $region27: #{tpu_custom_call.1} parent=23 // pred_region
          %98 = dma.done [#allocation5], 1024
        $region28: #{tpu_custom_call.1} parent=23 // pred_fallthru
          _
        %p99 = pneg %p35
        %p100 = pneg %p32
        %p101 = pneg %p56
        %p102 = pneg %p53
        %s103 = smul.u32 %s19, 128
        %s104 = sld [smem:[#allocation3 + %s103]]
        %s105 = scalar_lea.vmem [#allocation4], %s104
        %v106 = vld [vmem:[%s105] sm:$0x1]
        %v107 = vadd.f32 %v106, 0.0
        %s108 = sadd.s32 %s103, 1
        %s109 = sld [smem:[#allocation3 + %s108]]
        %s110 = scalar_lea.vmem [#allocation4], %s109
        %v111 = vld [vmem:[%s110] sm:$0x1]
        %v112 = vadd.f32 %v107, %v111
        %s113 = sadd.s32 %s103, 2
        %s114 = sld [smem:[#allocation3 + %s113]]
        %s115 = scalar_lea.vmem [#allocation4], %s114
        %v116 = vld [vmem:[%s115] sm:$0x1]
        %v117 = vadd.f32 %v112, %v116
        %s118 = sadd.s32 %s103, 3
        %s119 = sld [smem:[#allocation3 + %s118]]
        %s120 = scalar_lea.vmem [#allocation4], %s119
        %v121 = vld [vmem:[%s120] sm:$0x1]
        %v122 = vadd.f32 %v117, %v121
        %s123 = sadd.s32 %s103, 4
        %s124 = sld [smem:[#allocation3 + %s123]]
        %s125 = scalar_lea.vmem [#allocation4], %s124
        %v126 = vld [vmem:[%s125] sm:$0x1]
        %v127 = vadd.f32 %v122, %v126
        %s128 = sadd.s32 %s103, 5
        %s129 = sld [smem:[#allocation3 + %s128]]
        %s130 = scalar_lea.vmem [#allocation4], %s129
        %v131 = vld [vmem:[%s130] sm:$0x1]
        %v132 = vadd.f32 %v127, %v131
        %s133 = sadd.s32 %s103, 6
        %s134 = sld [smem:[#allocation3 + %s133]]
        %s135 = scalar_lea.vmem [#allocation4], %s134
        %v136 = vld [vmem:[%s135] sm:$0x1]
        %v137 = vadd.f32 %v132, %v136
        %s138 = sadd.s32 %s103, 7
        %s139 = sld [smem:[#allocation3 + %s138]]
        %s140 = scalar_lea.vmem [#allocation4], %s139
        %v141 = vld [vmem:[%s140] sm:$0x1]
        %v142 = vadd.f32 %v137, %v141
        %v143 = vmul.f32 %v142, 0.125
        %s144 = scalar_lea.vmem [#allocation7], %s19
        %145 = vst [vmem:[%s144] sm:$0x1] %v143
        // Predicated region
        $region29: #{tpu_custom_call.1} parent=23 // pred_check
          %p146 = pneg %p53
        $region30: #{tpu_custom_call.1} parent=23 // pred_check_branch
          %148 = sbr.rel (%p146) target = $region32
        $region31: #{tpu_custom_call.1} parent=23 // pred_region
          %s150 = ssub.s32 32, 32
          %151 = vsyncadd [#allocation6], %s150
          %s153 = sshll.u32 [#allocation7], 4
          %s154 = int_to_ptr.vmem [resolvable:$true] %s153
          %156 = dma.vmem_to_hbm [thread:$0]  %s154, 32, %s2, [#allocation6]
        $region32: #{tpu_custom_call.1} parent=23 // pred_fallthru
          _
        // Predicated region
        $region33: #{tpu_custom_call.1} parent=23 // pred_check
          %p157 = pneg %p53
        $region34: #{tpu_custom_call.1} parent=23 // pred_check_branch
          %159 = sbr.rel (%p157) target = $region36
        $region35: #{tpu_custom_call.1} parent=23 // pred_region
          %160 = dma.done [#allocation6], 32
        $region36: #{tpu_custom_call.1} parent=23 // pred_fallthru
          _
      $region24: #{tpu_custom_call.1} parent=5 // pred_fallthru
        _
      %p161 = scmp.le.s32.totalorder 2, %s14
      // Predicated region
      $region37: #{tpu_custom_call.1} parent=5 // pred_check
        %p162 = pneg %p161
      $region38: #{tpu_custom_call.1} parent=5 // pred_check_branch
        %164 = sbr.rel (%p162) target = $region40
      $region39: #{tpu_custom_call.1} parent=5 // pred_region
        %s165 = ssub.s32 %s14, 2
      $region40: #{tpu_custom_call.1} parent=5 // pred_fallthru
        _
    $region6: #{tpu_custom_call.1} parent=1 // loop_footer
      %s18 = sadd.s32 1, %s14
    $region7: #{tpu_custom_call.1} parent=1 // loop_footer_branch
      %13 = sbr.rel target = $region3
    $region8: #{tpu_custom_call.1} parent=1 // loop_exit
      _
    %166 = vsyncpa [#allocation5], 1
    %s167 = scalar_lea.sflag [#allocation5], 1
    %168 = vsyncpa %s167, 1
    %169 = vsyncpa [#allocation6], 1
    %s170 = scalar_lea.sflag [#allocation6], 1
    %171 = vsyncpa %s170, 1

</llo_original>
